<compile_context>
chip_gen: v7x
topology: tpu7x:2x2x1
jax: 0.10.0
libtpu: 0.0.40
codegen_flags: <defaults>
</compile_context>

<pallas_src>
import functools
from typing import NamedTuple

import jax
import jax.numpy as jnp
from jax.experimental import pallas as pl
from jax.experimental.pallas import tpu as pltpu

LANE = 128


def _cdiv(a, b):
    return (a + b - 1) // b


def _round_up(x, m):
    return _cdiv(x, m) * m


def _sublane_align(dtype):
    # bf16 packs 16 rows per vreg sublane group; f32 packs 8.
    return 16 if jnp.dtype(dtype).itemsize == 2 else 8


def _balanced_tile(size, max_tile, align):
    """Largest tile <= max_tile (multiple of `align`) that minimizes padding."""
    size_al = _round_up(size, align)
    if size_al <= max_tile:
        return size_al
    n_blocks = _cdiv(size_al, max_tile)
    return _round_up(_cdiv(size_al, n_blocks), align)


def _vmem_capacity_bytes():
    """Generation-aware physical VMEM (v5e/v6e: 128 MiB, v7x: 64 MiB per TC)."""
    try:
        return int(pltpu.get_tpu_info().vmem_capacity_bytes)
    except Exception:
        return 64 * 1024 * 1024   # conservative fallback, valid on all gens


# ----------------------------- kernels ------------------------------------


def _fc_kernel_single_k(x_ref, w_ref, b_ref, o_ref, *, use_relu):
    """K fits in one block: no accumulator scratch, direct fused epilogue."""
    y = jnp.dot(x_ref[...], w_ref[...], preferred_element_type=jnp.float32)
    y = y + b_ref[...].astype(jnp.float32)
    if use_relu:
        y = jnp.maximum(y, 0.0)
    o_ref[...] = y.astype(o_ref.dtype)


def _fc_kernel_multi_k(x_ref, w_ref, b_ref, o_ref, acc_ref, *, use_relu):
    """Accumulate one (tm, tn) output tile over the K grid axis."""
    k = pl.program_id(2)
    prod = jnp.dot(x_ref[...], w_ref[...], preferred_element_type=jnp.float32)

    @pl.when(k == 0)
    def _():
        acc_ref[...] = prod          # assign: skips zero-fill + add on step 0

    @pl.when(k != 0)
    def _():
        acc_ref[...] += prod

    @pl.when(k == pl.num_programs(2) - 1)
    def _():
        # Epilogue (bias + ReLU + cast) runs once per output tile.
        y = acc_ref[...] + b_ref[...].astype(jnp.float32)
        if use_relu:
            y = jnp.maximum(y, 0.0)
        o_ref[...] = y.astype(o_ref.dtype)


# --------------------------- param packing --------------------------------


class FCPackedParams(NamedTuple):
    w: jax.Array        # [k_pad, n_pad], compute dtype
    b: jax.Array        # [1, n_pad], float32
    in_size: int
    out_size: int
    tn: int
    tk: int


def pack_fc_params(weight, bias, *, tn=1024, tk=512,
                   compute_dtype=jnp.bfloat16):
    """Hoist nn.Linear weight transpose + cast + pad out of the hot path.

    weight: [out_size, in_size] (PyTorch nn.Linear convention)
    bias:   [out_size]
    """
    out_size, in_size = weight.shape
    tk_eff = _balanced_tile(in_size, tk, LANE)
    tn_eff = _balanced_tile(out_size, tn, LANE)
    k_pad = _round_up(in_size, tk_eff)
    n_pad = _round_up(out_size, tn_eff)

    w_t = weight.T.astype(compute_dtype)                    # [in, out]
    w_t = jnp.pad(w_t, ((0, k_pad - in_size), (0, n_pad - out_size)))
    b2d = jnp.pad(bias.astype(jnp.float32).reshape(1, out_size),
                  ((0, 0), (0, n_pad - out_size)))
    return FCPackedParams(w_t, b2d, in_size, out_size, tn_eff, tk_eff)


# ------------------------------ forward -----------------------------------


def fully_connected_layer(x, params: FCPackedParams, *, use_relu=True,
                          dropout_r=0.0, training=False, out_dtype=None,
                          tm=512):
    """Pallas equivalent of FullyConnectedLayer.forward with pre-packed params."""
    if training and dropout_r > 0.0:
        # TODO(synk): training-mode dropout needs pltpu.prng_seed/prng_random_bits.
        raise NotImplementedError("training-mode dropout not implemented")

    w, b2d, in_size, out_size, tn_eff, tk_eff = params
    compute_dtype = w.dtype
    out_dtype = x.dtype if out_dtype is None else out_dtype

    orig_lead = x.shape[:-1]
    x2d = x.reshape(-1, in_size).astype(compute_dtype)
    n_rows = x2d.shape[0]

    k_pad, n_pad = w.shape

    m_align = _sublane_align(compute_dtype)
    tm_eff = _balanced_tile(n_rows, tm, m_align)
    m_pad = _round_up(n_rows, tm_eff)

    # If the M/N grid collapses to a single block, split M so both v7x
    # TensorCores get work via the "parallel" dimension semantics.
    if (m_pad // tm_eff) * (n_pad // tn_eff) == 1 and m_pad >= 2 * m_align:
        tm_eff = _round_up(_cdiv(m_pad, 2), m_align)
        m_pad = _round_up(n_rows, tm_eff)

    x2d = jnp.pad(x2d, ((0, m_pad - n_rows), (0, k_pad - in_size)))

    m_blocks = m_pad // tm_eff
    n_blocks = n_pad // tn_eff
    k_blocks = k_pad // tk_eff

    op_isize = jnp.dtype(compute_dtype).itemsize
    out_isize = jnp.dtype(out_dtype).itemsize
    footprint = (2 * (tm_eff * tk_eff + tk_eff * tn_eff) * op_isize
                 + 2 * tm_eff * tn_eff * out_isize
                 + (tm_eff * tn_eff * 4 if k_blocks > 1 else 0)
                 + 2 * tn_eff * 4)
    vmem_cap = _vmem_capacity_bytes()
    vmem_limit = min(max(int(footprint * 2), 32 * 1024 * 1024),
                     int(vmem_cap * 0.9))

    cost = pl.CostEstimate(
        flops=2 * m_pad * n_pad * k_pad,
        transcendentals=0,
        bytes_accessed=(m_pad * k_pad * op_isize * n_blocks
                        + k_pad * n_pad * op_isize * m_blocks
                        + m_pad * n_pad * out_isize
                        + n_pad * 4),
    )

    if k_blocks == 1:
        kernel = functools.partial(_fc_kernel_single_k, use_relu=use_relu)
        grid_spec = pltpu.PrefetchScalarGridSpec(
            num_scalar_prefetch=0,
            grid=(m_blocks, n_blocks),
            in_specs=[
                pl.BlockSpec((tm_eff, tk_eff), lambda i, j: (i, 0)),
                pl.BlockSpec((tk_eff, tn_eff), lambda i, j: (0, j)),
                pl.BlockSpec((1, tn_eff), lambda i, j: (0, j)),
            ],
            out_specs=pl.BlockSpec((tm_eff, tn_eff), lambda i, j: (i, j)),
            scratch_shapes=[],
        )
        semantics = ("parallel", "parallel")
    else:
        kernel = functools.partial(_fc_kernel_multi_k, use_relu=use_relu)
        grid_spec = pltpu.PrefetchScalarGridSpec(
            num_scalar_prefetch=0,
            grid=(m_blocks, n_blocks, k_blocks),
            in_specs=[
                pl.BlockSpec((tm_eff, tk_eff), lambda i, j, k: (i, k)),
                pl.BlockSpec((tk_eff, tn_eff), lambda i, j, k: (k, j)),
                pl.BlockSpec((1, tn_eff), lambda i, j, k: (0, j)),
            ],
            out_specs=pl.BlockSpec((tm_eff, tn_eff), lambda i, j, k: (i, j)),
            scratch_shapes=[pltpu.VMEM((tm_eff, tn_eff), jnp.float32)],
        )
        semantics = ("parallel", "parallel", "arbitrary")

    out = pl.pallas_call(
        kernel,
        out_shape=jax.ShapeDtypeStruct((m_pad, n_pad), out_dtype),
        grid_spec=grid_spec,
        compiler_params=pltpu.CompilerParams(
            dimension_semantics=semantics,
            vmem_limit_bytes=vmem_limit,
        ),
        cost_estimate=cost,
    )(x2d, w, b2d)

    out = out[:n_rows, :out_size]
    # dropout_r == 0.0 (or eval mode) -> identity.
    return out.reshape(*orig_lead, out_size)


def fully_connected_layer_unpacked(x, weight, bias, *, use_relu=True,
                                   dropout_r=0.0, training=False,
                                   compute_dtype=jnp.bfloat16, out_dtype=None,
                                   tm=512, tn=1024, tk=512):
    """nn.Linear-style API (packs params each call; prefer pack_fc_params once)."""
    params = pack_fc_params(weight, bias, tn=tn, tk=tk,
                            compute_dtype=compute_dtype)
    return fully_connected_layer(x, params, use_relu=use_relu,
                                 dropout_r=dropout_r, training=training,
                                 out_dtype=out_dtype, tm=tm)


if __name__ == "__main__":
    key = jax.random.PRNGKey(0)
    k_x, k_w, k_b = jax.random.split(key, 3)

    # --- Test 1: module-typical (batch, seq, hidden), bf16 operands,
    #             single-K-step (no-scratch) kernel path. ---
    batch, seq, in_size, out_size = 2, 8, 32, 32
    bound = 1.0 / (in_size ** 0.5)
    weight = jax.random.uniform(k_w, (out_size, in_size), jnp.float32,
                                minval=-bound, maxval=bound)
    bias = jax.random.uniform(k_b, (out_size,), jnp.float32,
                              minval=-bound, maxval=bound)
    x = jax.random.normal(k_x, (batch, seq, in_size), jnp.float32)

    params = pack_fc_params(weight, bias)   # packed once, outside hot path
    y = fully_connected_layer(x, params, use_relu=True, dropout_r=0.0)
    y = jax.block_until_ready(y)

    y_ref = jnp.maximum(x @ weight.T + bias, 0.0)
    assert y.shape == (batch, seq, out_size)
    assert jnp.allclose(y, y_ref, atol=5e-2, rtol=5e-2), \
        float(jnp.max(jnp.abs(y - y_ref)))

    # --- Test 2: non-aligned dims, f32 operands, multi-K accumulator path. ---
    k_x2, k_w2, k_b2 = jax.random.split(jax.random.PRNGKey(1), 3)
    m2, k2, n2 = 300, 384, 200
    bound2 = 1.0 / (k2 ** 0.5)
    w2 = jax.random.uniform(k_w2, (n2, k2), jnp.float32,
                            minval=-bound2, maxval=bound2)
    b2 = jax.random.uniform(k_b2, (n2,), jnp.float32,
                            minval=-bound2, maxval=bound2)
    x2 = jax.random.normal(k_x2, (m2, k2), jnp.float32)

    params2 = pack_fc_params(w2, b2, tn=128, tk=128,
                             compute_dtype=jnp.float32)
    y2 = fully_connected_layer(x2, params2, use_relu=False, dropout_r=0.0,
                               tm=128)
    y2 = jax.block_until_ready(y2)

    y2_ref = x2 @ w2.T + b2
    assert y2.shape == (m2, n2)
    assert jnp.allclose(y2, y2_ref, atol=1e-4, rtol=1e-4), \
        float(jnp.max(jnp.abs(y2 - y2_ref)))

    print("KERNEL_OK")
</pallas_src>

<mosaic_0001>
module attributes {stable_mosaic.version = 11 : i64} {
  func.func @_fc_kernel_single_k(%arg0: i32, %arg1: i32, %arg2: memref<16x128xbf16, #tpu.memory_space<vmem>>, %arg3: memref<128x128xbf16, #tpu.memory_space<vmem>>, %arg4: memref<1x128xf32, #tpu.memory_space<vmem>>, %arg5: memref<16x128xf32, #tpu.memory_space<vmem>>) attributes {dimension_semantics = [#tpu.dimension_semantics<parallel>, #tpu.dimension_semantics<parallel>], iteration_bounds = array<i64: 1, 1>, scalar_prefetch = 0 : i64, scratch_operands = 0 : i64, tpu.core_type = #tpu.core_type<tc>, window_params = [{transform_indices = @transform_0, window_bounds = array<i64: 16, 128>}, {transform_indices = @transform_1, window_bounds = array<i64: 128, 128>}, {transform_indices = @transform_2, window_bounds = array<i64: 1, 128>}, {transform_indices = @transform_3, window_bounds = array<i64: 16, 128>}]} {
    %c0 = arith.constant 0 : index
    %c0_0 = arith.constant 0 : index
    %0 = vector.load %arg2[%c0, %c0_0] : memref<16x128xbf16, #tpu.memory_space<vmem>>, vector<16x128xbf16>
    %c0_1 = arith.constant 0 : index
    %c0_2 = arith.constant 0 : index
    %1 = vector.load %arg3[%c0_1, %c0_2] : memref<128x128xbf16, #tpu.memory_space<vmem>>, vector<128x128xbf16>
    %cst = arith.constant dense<0.000000e+00> : vector<16x128xf32>
    %2 = tpu.matmul %0, %1, %cst {dimension_numbers = #tpu.dot_dimension_numbers<[1], [0], [0], [1], [0, 0, 1, 1], [], []>} : vector<16x128xbf16>, vector<128x128xbf16>, vector<16x128xf32> -> vector<16x128xf32>
    %c0_3 = arith.constant 0 : index
    %c0_4 = arith.constant 0 : index
    %3 = vector.load %arg4[%c0_3, %c0_4] : memref<1x128xf32, #tpu.memory_space<vmem>>, vector<1x128xf32>
    %4 = vector.broadcast %3 : vector<1x128xf32> to vector<16x128xf32>
    %5 = arith.addf %2, %4 : vector<16x128xf32>
    %cst_5 = arith.constant 0.000000e+00 : f32
    %6 = vector.broadcast %cst_5 : f32 to vector<16x128xf32>
    %7 = arith.maximumf %5, %6 : vector<16x128xf32>
    %c0_6 = arith.constant 0 : index
    %c0_7 = arith.constant 0 : index
    %8 = vector.load %arg5[%c0_6, %c0_7] : memref<16x128xf32, #tpu.memory_space<vmem>>, vector<16x128xf32>
    tpu.vector_store %arg5[%c0_6, %c0_7], %7 {strides = array<i32>} : memref<16x128xf32, #tpu.memory_space<vmem>>, vector<16x128xf32>,
    return
  }
  func.func @transform_0(%arg0: i32, %arg1: i32) -> (i32, i32) {
    %c0_i32 = arith.constant 0 : i32
    %c0_i32_0 = arith.constant 0 : i32
    return %arg0, %c0_i32 : i32, i32
  }
  func.func @transform_1(%arg0: i32, %arg1: i32) -> (i32, i32) {
    %c0_i32 = arith.constant 0 : i32
    %c0_i32_0 = arith.constant 0 : i32
    return %c0_i32, %arg1 : i32, i32
  }
  func.func @transform_2(%arg0: i32, %arg1: i32) -> (i32, i32) {
    %c0_i32 = arith.constant 0 : i32
    %c0_i32_0 = arith.constant 0 : i32
    return %c0_i32, %arg1 : i32, i32
  }
  func.func @transform_3(%arg0: i32, %arg1: i32) -> (i32, i32) {
    %c0_i32 = arith.constant 0 : i32
    return %arg0, %arg1 : i32, i32
  }
}

</mosaic_0001>

<llo_original>
// kernel: tpu_custom_call.1
$region0: #{tpu_custom_call.1}
  #allocation0 [shape = 'u32[]', space=smem, size = 0x4, offset = 0x4, fixed_abs, tag = 'smem constant byte address 0x4 - core index']
  #allocation1 [shape = 'u32[144,128]{1,0:T(1,128)}', space=vmem, size = 0x12000, scoped, tag = 'internal scratch']
  %s0 = inlined_call_operand.hbm [shape: bf16[16,128], index: 0, kind: input, shape index: {}]
  %s1 = inlined_call_operand.hbm [shape: bf16[128,128], index: 1, kind: input, shape index: {}]
  %s2 = inlined_call_operand.vmem [shape: f32[1,128], index: 2, kind: input, shape index: {}]
  %s3 = inlined_call_operand.hbm [shape: f32[16,128], index: 3, kind: output, shape index: {}]
  %s4 = sld [smem:[#allocation0]]
  $region30: #{tpu_custom_call.1} parent=0
    _
  %s6 = ssub.s32 1, %s4
  %s7 = scalar_select 0, %s6, %s4
  $region1: #{tpu_custom_call.1} parent=0
    #allocation2 [shape = 'u8[4096]{0}', space=vmem, size = 0x1000, scoped, tag = 'input window, operand 0, single buffered']
    #allocation3 [shape = 's32[1]{0}', space=sflag, size = 0x4, scoped, tag = 'scoped memory for tpu_custom_call.1']
    #allocation4 [shape = 's32[1]{0}', space=sflag, size = 0x4, scoped, tag = 'scoped memory for tpu_custom_call.1']
    #allocation5 [shape = 'u8[32768]{0}', space=vmem, size = 0x8000, scoped, tag = 'input window, operand 1, single buffered']
    #allocation6 [shape = 's32[1]{0}', space=sflag, size = 0x4, scoped, tag = 'scoped memory for tpu_custom_call.1']
    #allocation7 [shape = 'u8[8192]{0}', space=vmem, size = 0x2000, scoped, tag = 'output window, operand 0, single buffered']
    %8 = vsyncpa [#allocation3], 0
    %9 = vsyncpa [#allocation6], 0
    %10 = vsyncpa [#allocation4], 0
    // Predicated region
    $region2: #{tpu_custom_call.1} parent=1 // pred_check
      _
    $region3: #{tpu_custom_call.1} parent=1 // pred_check_branch
      %12 = sbr.rel (0) target = $region5
    $region4: #{tpu_custom_call.1} parent=1 // pred_region
      %s14 = ssub.s32 128, 128
      %15 = vsyncadd [#allocation3], %s14
      %s16 = sshll.u32 [#allocation2], 4
      %s17 = int_to_ptr.vmem [resolvable:$true] %s16
      %22 = dma.hbm_to_vmem [thread:$0]  %s0, 128, %s17, [#allocation3], 64, 64, 4
    $region5: #{tpu_custom_call.1} parent=1 // pred_fallthru
      _
    // Predicated region
    $region6: #{tpu_custom_call.1} parent=1 // pred_check
      _
    $region7: #{tpu_custom_call.1} parent=1 // pred_check_branch
      %24 = sbr.rel (0) target = $region9
    $region8: #{tpu_custom_call.1} parent=1 // pred_region
      %s26 = ssub.s32 1024, 1024
      %27 = vsyncadd [#allocation6], %s26
      %s28 = sshll.u32 [#allocation5], 4
      %s29 = int_to_ptr.vmem [resolvable:$true] %s28
      %34 = dma.hbm_to_vmem [thread:$0]  %s1, 1024, %s29, [#allocation6], 64, 64, 4
    $region9: #{tpu_custom_call.1} parent=1 // pred_fallthru
      _
    // Predicated region
    $region10: #{tpu_custom_call.1} parent=1 // pred_check
      _
    $region11: #{tpu_custom_call.1} parent=1 // pred_check_branch
      %36 = sbr.rel (0) target = $region13
    $region12: #{tpu_custom_call.1} parent=1 // pred_region
      _
    $region13: #{tpu_custom_call.1} parent=1 // pred_fallthru
      _
    // Predicated region
    $region14: #{tpu_custom_call.1} parent=1 // pred_check
      _
    $region15: #{tpu_custom_call.1} parent=1 // pred_check_branch
      %38 = sbr.rel (0) target = $region17
    $region16: #{tpu_custom_call.1} parent=1 // pred_region
      %39 = dma.done [#allocation3], 128
    $region17: #{tpu_custom_call.1} parent=1 // pred_fallthru
      _
    // Predicated region
    $region18: #{tpu_custom_call.1} parent=1 // pred_check
      _
    $region19: #{tpu_custom_call.1} parent=1 // pred_check_branch
      %41 = sbr.rel (0) target = $region21
    $region20: #{tpu_custom_call.1} parent=1 // pred_region
      %42 = dma.done [#allocation6], 1024
    $region21: #{tpu_custom_call.1} parent=1 // pred_fallthru
      _
    %v44 = vld [vmem:[#allocation2] sm:$0xf]
    %v45 = vld [vmem:[#allocation2 + $0x4] sm:$0xf]
    %v46 = vld [vmem:[#allocation5] sm:$0xf]
    %v47 = vld [vmem:[#allocation5 + $0x4] sm:$0xf]
    %v48 = vld [vmem:[#allocation5 + $0x8] sm:$0xf]
    %v49 = vld [vmem:[#allocation5 + $0xc] sm:$0xf]
    %v50 = vld [vmem:[#allocation5 + $0x10] sm:$0xf]
    %v51 = vld [vmem:[#allocation5 + $0x14] sm:$0xf]
    %v52 = vld [vmem:[#allocation5 + $0x18] sm:$0xf]
    %v53 = vld [vmem:[#allocation5 + $0x1c] sm:$0xf]
    %v54 = vld [vmem:[#allocation5 + $0x20] sm:$0xf]
    %v55 = vld [vmem:[#allocation5 + $0x24] sm:$0xf]
    %v56 = vld [vmem:[#allocation5 + $0x28] sm:$0xf]
    %v57 = vld [vmem:[#allocation5 + $0x2c] sm:$0xf]
    %v58 = vld [vmem:[#allocation5 + $0x30] sm:$0xf]
    %v59 = vld [vmem:[#allocation5 + $0x34] sm:$0xf]
    %v60 = vld [vmem:[#allocation5 + $0x38] sm:$0xf]
    %v61 = vld [vmem:[#allocation5 + $0x3c] sm:$0xf]
    %v62 = vld [vmem:[%s2] sm:$0x1]
    %v64 = vlaneseq
    %v65 = vshrl.u32 %v64, 7
    %v66 = vsub.s32 0, %v65
    %v67 = vrot.slane %v62, %v66
    %v71 = vunpack.c.l.b16 %v44
    %v72 = vunpack.c.l.b16 %v45
    %v73 = vpack.c.b16 %v72, %v71
    %v91 = vunpack.c.l.b16 %v46
    %v92 = vunpack.c.l.b16 %v47
    %v93 = vunpack.c.l.b16 %v48
    %v94 = vunpack.c.l.b16 %v49
    %v95 = vunpack.c.l.b16 %v50
    %v96 = vunpack.c.l.b16 %v51
    %v97 = vunpack.c.l.b16 %v52
    %v98 = vunpack.c.l.b16 %v53
    %v99 = vunpack.c.l.b16 %v54
    %v100 = vunpack.c.l.b16 %v55
    %v101 = vunpack.c.l.b16 %v56
    %v102 = vunpack.c.l.b16 %v57
    %v103 = vunpack.c.l.b16 %v58
    %v104 = vunpack.c.l.b16 %v59
    %v105 = vunpack.c.l.b16 %v60
    %v106 = vunpack.c.l.b16 %v61
    %v107 = vpack.c.b16 %v92, %v91
    %v108 = vpack.c.b16 %v94, %v93
    %v109 = vpack.c.b16 %v96, %v95
    %v110 = vpack.c.b16 %v98, %v97
    %v111 = vpack.c.b16 %v100, %v99
    %v112 = vpack.c.b16 %v102, %v101
    %v113 = vpack.c.b16 %v104, %v103
    %v114 = vpack.c.b16 %v106, %v105
    %123 = vmatprep.subr.bf16.mxu0 0
    %124 = vmatpush1.bf16.msra.mxu0 %v107
    %125 = vmatprep.subr.bf16.mxu0 0
    %126 = vmatpush1.bf16.msra.mxu0 %v108
    %127 = vmatprep.subr.bf16.mxu0 0
    %128 = vmatpush1.bf16.msra.mxu0 %v109
    %129 = vmatprep.subr.bf16.mxu0 0
    %130 = vmatpush1.bf16.msra.mxu0 %v110
    %131 = vmatprep.subr.bf16.mxu0 0
    %132 = vmatpush1.bf16.msra.mxu0 %v111
    %133 = vmatprep.subr.bf16.mxu0 0
    %134 = vmatpush1.bf16.msra.mxu0 %v112
    %135 = vmatprep.subr.bf16.mxu0 0
    %136 = vmatpush1.bf16.msra.mxu0 %v113
    %137 = vmatprep.subr.bf16.mxu0 0
    %138 = vmatpush1.bf16.msra.mxu0 %v114
    %139 = vmatprep.subr.bf16.mxu0 0
    %140 = vmatpush1.bf16.msra.mxu0 0
    %141 = vmatprep.subr.bf16.mxu0 0
    %142 = vmatpush1.bf16.msra.mxu0 0
    %143 = vmatprep.subr.bf16.mxu0 0
    %144 = vmatpush1.bf16.msra.mxu0 0
    %145 = vmatprep.subr.bf16.mxu0 0
    %146 = vmatpush1.bf16.msra.mxu0 0
    %147 = vmatprep.subr.bf16.mxu0 0
    %148 = vmatpush1.bf16.msra.mxu0 0
    %149 = vmatprep.subr.bf16.mxu0 0
    %150 = vmatpush1.bf16.msra.mxu0 0
    %151 = vmatprep.subr.bf16.mxu0 0
    %152 = vmatpush1.bf16.msra.mxu0 0
    %153 = vmatprep.subr.bf16.mxu0 0
    %154 = vmatpush1.bf16.msra.mxu0 0
    %155 = vmatprep.mubr.bf16.mxu0 0
    %156 = vmatmul.mubr.bf16.gmra.mrb[0].mxu0 %v73
    %v157 = vpop.f32.mrb[0].mxu0
    %v158 = vadd.f32 %v67, %v157
    %v159 = vpop.f32.mrb[0].mxu0
    %v160 = vpop.f32.mrb[0].mxu0
    %v161 = vadd.f32 %v67, %v160
    %v162 = vpop.f32.mrb[0].mxu0
    %163 = vdwg.mxu0
    %v164 = vmax.f32 %v158, 0.0
    %v165 = vmax.f32 %v161, 0.0
    %166 = vst [vmem:[#allocation7] sm:$0xff] %v164
    %167 = vst [vmem:[#allocation7 + $0x8] sm:$0xff] %v165
    // Predicated region
    $region22: #{tpu_custom_call.1} parent=1 // pred_check
      _
    $region23: #{tpu_custom_call.1} parent=1 // pred_check_branch
      %169 = sbr.rel (0) target = $region25
    $region24: #{tpu_custom_call.1} parent=1 // pred_region
      %s171 = ssub.s32 256, 256
      %172 = vsyncadd [#allocation4], %s171
      %s173 = sshll.u32 [#allocation7], 4
      %s174 = int_to_ptr.vmem [resolvable:$true] %s173
      %179 = dma.vmem_to_hbm [thread:$0]  %s174, 256, %s3, [#allocation4], 128, 128, 8
    $region25: #{tpu_custom_call.1} parent=1 // pred_fallthru
      _
    // Predicated region
    $region26: #{tpu_custom_call.1} parent=1 // pred_check
      _
    $region27: #{tpu_custom_call.1} parent=1 // pred_check_branch
      %181 = sbr.rel (0) target = $region29
    $region28: #{tpu_custom_call.1} parent=1 // pred_region
      %182 = dma.done [#allocation4], 256
    $region29: #{tpu_custom_call.1} parent=1 // pred_fallthru
      _
    %183 = vsyncpa [#allocation3], 1
    %184 = vsyncpa [#allocation6], 1
    %185 = vsyncpa [#allocation4], 1

</llo_original>
